<compile_context>
chip_gen: v6e
topology: v6e:2x2x1
jax: 0.10.0
libtpu: 0.0.40
codegen_flags: <defaults>
</compile_context>

<pallas_src>
import functools

import jax
import jax.numpy as jnp
from jax.experimental import pallas as pl
from jax.experimental.pallas import tpu as pltpu


def gaussian_encoder_kernel(h_ref, L_ref, U_ref, X_ref, W_ref, b_ref, out_ref, *, M):
    # One up-cast per tile (bf16 -> f32), hoisted out of the elementwise chain.
    Lb = L_ref[...].astype(jnp.float32)   # (Bt, N)    eigenvalues
    Ub = U_ref[...].astype(jnp.float32)   # (Bt, N, N) eigenvectors (columns)
    Xb = X_ref[...].astype(jnp.float32)   # (Bt, N, F) dense node features

    # diagonal_filter = sum_p h[p] * L**p  -- Horner form, SMEM scalar coeffs.
    fl = h_ref.shape[0]
    filt = h_ref[fl - 1] * jnp.ones_like(Lb)             # (Bt, N)
    for p in range(fl - 2, -1, -1):
        filt = filt * Lb + h_ref[p]

    # graph_state = 1^T U diag(filt) U^T X  (node-sum folded into the contraction)
    c = jnp.sum(Ub, axis=1)                              # (Bt, N): colsum over nodes
    v = (c * filt)[:, None, :]                           # (Bt, 1, N)
    w = jnp.sum(Ub * v, axis=2, keepdims=True)           # (Bt, N, 1): back to node space
    gs = jnp.sum(Xb * w, axis=1)                         # (Bt, F):   weighted feature sum

    # Linear head into the lane-dense padded slab; exp fused on the std half
    # (EUP slot, free under the HBM-bound roofline): [mean | exp(std) | zeros].
    y = jnp.dot(gs, W_ref[...], preferred_element_type=jnp.float32) + b_ref[...]
    col = jax.lax.broadcasted_iota(jnp.int32, y.shape, 1)
    out_ref[...] = jnp.where((col >= M) & (col < 2 * M), jnp.exp(y), y)


def _round_up(x, m):
    return ((x + m - 1) // m) * m


def _vmem_budget_bytes():
    """~3/4 of physical VMEM: ~48 MiB on v7x, ~96 MiB on v5e/v6e."""
    try:
        cap = pltpu.get_tpu_info().vmem_capacity_bytes
    except Exception:
        cap = 64 * 1024 * 1024            # conservative (v7x-sized) fallback
    return int(cap * 3 // 4)


def _choose_block_graphs(B, N, F, out_w_pad, ux_bytes_per_graph, vmem_budget,
                         target_block_bytes=2 << 20):
    """Graphs per grid step: ~target bytes of U+X per block, VMEM-capped,
    multiple of 8, and >=2 grid steps whenever the batch allows (v7x megacore)."""
    bt = max(8, target_block_bytes // max(ux_bytes_per_graph, 1))
    per_graph_all = N * 4 + ux_bytes_per_graph + out_w_pad * 4     # L + U + X + out
    fixed = 2 * (F + 1) * out_w_pad * 4                            # W + bias (buffered)
    bt_vmem = (vmem_budget - fixed) // (2 * per_graph_all)         # double buffering
    bt = min(bt, max(8, bt_vmem))
    bt = min(bt, _round_up(B, 8))                                  # don't overshoot batch
    if B > 8:
        bt = min(bt, max(8, ((B - 1) // 8) * 8))                   # keep >=2 grid steps
    return max(8, (bt // 8) * 8)


def gaussian_encoder_conv(L, U, Xd, h, W, b, M, *, block_graphs=None,
                          compute_dtype=jnp.bfloat16):
    """Run the Pallas kernel over all graphs.  Returns (mean, scale), each (B, M).

    compute_dtype=bf16 (default) halves the dominant HBM->VMEM transfer (U: N^2
    elements per graph).  Accumulation and the head stay f32; pass
    compute_dtype=jnp.float32 for bit-tight validation.
    """
    B, N = L.shape
    F = Xd.shape[-1]
    FL = h.shape[0]
    out_w = 2 * M
    out_w_pad = _round_up(out_w, 128)                   # lane-dense output width

    dtype_bytes = jnp.dtype(compute_dtype).itemsize
    ux_bytes = N * N * dtype_bytes + N * F * dtype_bytes
    vmem_budget = _vmem_budget_bytes()
    if block_graphs is None:
        Bt = _choose_block_graphs(B, N, F, out_w_pad, ux_bytes, vmem_budget)
    else:
        Bt = max(8, _round_up(block_graphs, 8))
    B_pad = pl.cdiv(B, Bt) * Bt

    L2 = L.astype(jnp.float32)                          # (B, N): no singleton dim
    U3 = U.astype(compute_dtype)
    X3 = Xd.astype(compute_dtype)
    if B_pad != B:
        pad = B_pad - B
        L2 = jnp.pad(L2, ((0, pad), (0, 0)))
        U3 = jnp.pad(U3, ((0, pad), (0, 0), (0, 0)))
        X3 = jnp.pad(X3, ((0, pad), (0, 0), (0, 0)))

    h1 = h.reshape(FL).astype(jnp.float32)
    Wp = jnp.zeros((F, out_w_pad), jnp.float32).at[:, :out_w].set(W.astype(jnp.float32))
    bp = jnp.zeros((1, out_w_pad), jnp.float32).at[:, :out_w].set(
        b.reshape(1, out_w).astype(jnp.float32))

    out = pl.pallas_call(
        functools.partial(gaussian_encoder_kernel, M=M),
        out_shape=jax.ShapeDtypeStruct((B_pad, out_w_pad), jnp.float32),
        grid=(B_pad // Bt,),
        in_specs=[
            pl.BlockSpec(memory_space=pltpu.MemorySpace.SMEM),     # h (scalar coeffs)
            pl.BlockSpec((Bt, N), lambda g: (g, 0)),               # L eigenvalues
            pl.BlockSpec((Bt, N, N), lambda g: (g, 0, 0)),         # U eigenvectors
            pl.BlockSpec((Bt, N, F), lambda g: (g, 0, 0)),         # X dense features
            pl.BlockSpec((F, out_w_pad), lambda g: (0, 0)),        # W (F, 2M padded)
            pl.BlockSpec((1, out_w_pad), lambda g: (0, 0)),        # bias
        ],
        out_specs=pl.BlockSpec((Bt, out_w_pad), lambda g: (g, 0)),
        compiler_params=pltpu.CompilerParams(
            dimension_semantics=("parallel",),                     # shard over 2 TCs (v7x)
            vmem_limit_bytes=vmem_budget),
    )(h1, L2, U3, X3, Wp, bp)

    mean = out[:B, :M]
    scale = out[:B, M:out_w]                            # exp already fused in-kernel
    return mean, scale


def to_dense(x, edge_index, batch, num_graphs, max_nodes):
    """JAX glue equivalent to to_dense_adj / to_dense_batch."""
    num_nodes = x.shape[0]
    counts = jnp.zeros((num_graphs,), jnp.int32).at[batch].add(1)
    offsets = jnp.concatenate(
        [jnp.zeros((1,), jnp.int32), jnp.cumsum(counts)[:-1].astype(jnp.int32)])
    local = jnp.arange(num_nodes, dtype=jnp.int32) - offsets[batch]
    X = jnp.zeros((num_graphs, max_nodes, x.shape[1]), x.dtype).at[batch, local].set(x)
    src, dst = edge_index[0], edge_index[1]
    g = batch[src]
    A = jnp.zeros((num_graphs, max_nodes, max_nodes), x.dtype
                  ).at[g, local[src], local[dst]].add(1.0)
    return A, X


if __name__ == "__main__":
    M = 8          # latent dim
    F = 16         # node_feature_dim
    FL = 4         # filter_length

    key = jax.random.PRNGKey(0)
    kx1, kx2, kh, kw, kb = jax.random.split(key, 5)

    # --- deterministic parameters (shapes from __init__) ---
    h = (1e-5 * jax.random.normal(kh, (FL,), dtype=jnp.float32)).at[0].set(1.0)
    W_torch = jax.random.normal(kw, (2 * M, F), dtype=jnp.float32) / jnp.sqrt(F)
    b_lin = 0.01 * jax.random.normal(kb, (2 * M,), dtype=jnp.float32)
    W = W_torch.T                                      # (F, 2M)

    def build_batch(B, N, kx):
        """Deterministic synthetic batch of ring-with-chord graphs."""
        num_nodes = B * N
        x = jax.random.normal(kx, (num_nodes, F), dtype=jnp.float32)
        batch = jnp.repeat(jnp.arange(B, dtype=jnp.int32), N)
        edges = []
        for g in range(B):
            off = g * N
            for i in range(N):
                j = (i + 1) % N
                c = (i + 5) % N
                edges += [(off + i, off + j), (off + j, off + i),
                          (off + i, off + c), (off + c, off + i)]
        edge_index = jnp.asarray(edges, dtype=jnp.int32).T        # (2, E)
        return x, edge_index, batch

    def reference(L, U, Xd):
        """Pure-JAX reference of the kernelized portion (original op order)."""
        filt = jnp.zeros_like(L)
        power = jnp.ones_like(L)
        for p in range(FL):
            if p > 0:
                power = power * L
            filt = filt + h[p] * power
        node_state = U @ (filt[..., None] * (jnp.swapaxes(U, 1, 2) @ Xd))
        graph_state = node_state.sum(1)
        out = graph_state @ W + b_lin
        return out[:, :M], jnp.exp(out[:, M:])

    # Small demo batch (B=2) + a slightly larger one (B=24) that exercises the
    # multi-step grid and the padded-graph path.
    for (B, N, kx) in [(2, 16, kx1), (24, 16, kx2)]:
        x, edge_index, batch = build_batch(B, N, kx)
        # TODO(synk): torch.linalg.eigh has no Pallas equivalent; computed with jnp.linalg.eigh.
        A, Xd = to_dense(x, edge_index, batch, B, N)
        L, U = jnp.linalg.eigh(A)

        mean_ref, scale_ref = reference(L, U, Xd)

        # f32 path: bit-tight validation of the kernelized portion.
        mean, scale = gaussian_encoder_conv(L, U, Xd, h, W, b_lin, M,
                                            compute_dtype=jnp.float32)
        jax.block_until_ready((mean, scale))
        assert jnp.allclose(mean, mean_ref, rtol=1e-4, atol=1e-4)
        assert jnp.allclose(scale, scale_ref, rtol=1e-4, atol=1e-4)

        # bf16 default path (halves the dominant U DMA): loose sanity check.
        mean_bf, scale_bf = gaussian_encoder_conv(L, U, Xd, h, W, b_lin, M)
        jax.block_until_ready((mean_bf, scale_bf))
        assert jnp.allclose(mean_bf, mean_ref, rtol=0.2, atol=0.2)
        assert jnp.allclose(jnp.log(scale_bf), jnp.log(scale_ref), rtol=0.2, atol=0.5)

    print("KERNEL_OK")
</pallas_src>

<mosaic_0001>
module attributes {stable_mosaic.version = 11 : i64} {
  func.func @gaussian_encoder_kernel(%arg0: i32, %arg1: memref<4xf32, #tpu.memory_space<smem>>, %arg2: memref<8x16xf32, #tpu.memory_space<vmem>>, %arg3: memref<8x16x16xf32, #tpu.memory_space<vmem>>, %arg4: memref<8x16x16xf32, #tpu.memory_space<vmem>>, %arg5: memref<16x128xf32, #tpu.memory_space<vmem>>, %arg6: memref<1x128xf32, #tpu.memory_space<vmem>>, %arg7: memref<8x128xf32, #tpu.memory_space<vmem>>) attributes {dimension_semantics = [#tpu.dimension_semantics<parallel>], iteration_bounds = array<i64: 1>, scalar_prefetch = 0 : i64, scratch_operands = 0 : i64, tpu.core_type = #tpu.core_type<tc>, window_params = [{transform_indices = @transform_0, window_bounds = array<i64: 4>}, {transform_indices = @transform_1, window_bounds = array<i64: 8, 16>}, {transform_indices = @transform_2, window_bounds = array<i64: 8, 16, 16>}, {transform_indices = @transform_3, window_bounds = array<i64: 8, 16, 16>}, {pipeline_mode = #tpu.pipeline_mode<synchronous>, transform_indices = @transform_4, window_bounds = array<i64: 16, 128>}, {pipeline_mode = #tpu.pipeline_mode<synchronous>, transform_indices = @transform_5, window_bounds = array<i64: 1, 128>}, {transform_indices = @transform_6, window_bounds = array<i64: 8, 128>}]} {
    %c0 = arith.constant 0 : index
    %c0_0 = arith.constant 0 : index
    %0 = vector.load %arg2[%c0, %c0_0] : memref<8x16xf32, #tpu.memory_space<vmem>>, vector<8x16xf32>
    %c0_1 = arith.constant 0 : index
    %c0_2 = arith.constant 0 : index
    %c0_3 = arith.constant 0 : index
    %1 = vector.load %arg3[%c0_1, %c0_2, %c0_3] : memref<8x16x16xf32, #tpu.memory_space<vmem>>, vector<8x16x16xf32>
    %c0_4 = arith.constant 0 : index
    %c0_5 = arith.constant 0 : index
    %c0_6 = arith.constant 0 : index
    %2 = vector.load %arg4[%c0_4, %c0_5, %c0_6] : memref<8x16x16xf32, #tpu.memory_space<vmem>>, vector<8x16x16xf32>
    %c3 = arith.constant 3 : index
    %3 = memref.load %arg1[%c3] : memref<4xf32, #tpu.memory_space<smem>>
    %cst = arith.constant 1.000000e+00 : f32
    %4 = vector.broadcast %cst : f32 to vector<8x16xf32>
    %5 = vector.broadcast %3 : f32 to vector<8x16xf32>
    %6 = arith.mulf %5, %4 : vector<8x16xf32>
    %7 = arith.mulf %6, %0 : vector<8x16xf32>
    %c2 = arith.constant 2 : index
    %8 = memref.load %arg1[%c2] : memref<4xf32, #tpu.memory_space<smem>>
    %9 = vector.broadcast %8 : f32 to vector<8x16xf32>
    %10 = arith.addf %7, %9 : vector<8x16xf32>
    %11 = arith.mulf %10, %0 : vector<8x16xf32>
    %c1 = arith.constant 1 : index
    %12 = memref.load %arg1[%c1] : memref<4xf32, #tpu.memory_space<smem>>
    %13 = vector.broadcast %12 : f32 to vector<8x16xf32>
    %14 = arith.addf %11, %13 : vector<8x16xf32>
    %15 = arith.mulf %14, %0 : vector<8x16xf32>
    %c0_7 = arith.constant 0 : index
    %16 = memref.load %arg1[%c0_7] : memref<4xf32, #tpu.memory_space<smem>>
    %17 = vector.broadcast %16 : f32 to vector<8x16xf32>
    %18 = arith.addf %15, %17 : vector<8x16xf32>
    %cst_8 = arith.constant dense<0.000000e+00> : vector<8x16xf32>
    %19 = vector.multi_reduction <add>, %1, %cst_8 [1] : vector<8x16x16xf32> to vector<8x16xf32>
    %20 = arith.mulf %19, %18 : vector<8x16xf32>
    %21 = vector.shape_cast %20 : vector<8x16xf32> to vector<8x1x16xf32>
    %22 = vector.broadcast %21 : vector<8x1x16xf32> to vector<8x16x16xf32>
    %23 = arith.mulf %1, %22 : vector<8x16x16xf32>
    %cst_9 = arith.constant dense<0.000000e+00> : vector<8x16xf32>
    %24 = vector.multi_reduction <add>, %23, %cst_9 [2] : vector<8x16x16xf32> to vector<8x16xf32>
    %25 = vector.shape_cast %24 : vector<8x16xf32> to vector<8x16x1xf32>
    %26 = vector.broadcast %25 : vector<8x16x1xf32> to vector<8x16x16xf32>
    %27 = arith.mulf %2, %26 : vector<8x16x16xf32>
    %cst_10 = arith.constant dense<0.000000e+00> : vector<8x16xf32>
    %28 = vector.multi_reduction <add>, %27, %cst_10 [1] : vector<8x16x16xf32> to vector<8x16xf32>
    %c0_11 = arith.constant 0 : index
    %c0_12 = arith.constant 0 : index
    %29 = vector.load %arg5[%c0_11, %c0_12] : memref<16x128xf32, #tpu.memory_space<vmem>>, vector<16x128xf32>
    %cst_13 = arith.constant dense<0.000000e+00> : vector<8x128xf32>
    %30 = tpu.matmul %28, %29, %cst_13 {dimension_numbers = #tpu.dot_dimension_numbers<[1], [0], [0], [1], [0, 0, 1, 1], [], []>} : vector<8x16xf32>, vector<16x128xf32>, vector<8x128xf32> -> vector<8x128xf32>
    %c0_14 = arith.constant 0 : index
    %c0_15 = arith.constant 0 : index
    %31 = vector.load %arg6[%c0_14, %c0_15] : memref<1x128xf32, #tpu.memory_space<vmem>>, vector<1x128xf32>
    %32 = vector.broadcast %31 : vector<1x128xf32> to vector<8x128xf32>
    %33 = arith.addf %30, %32 : vector<8x128xf32>
    %34 = tpu.iota {dimensions = array<i32: 1>} : vector<8x128xi32>
    %c8_i32 = arith.constant 8 : i32
    %35 = vector.broadcast %c8_i32 : i32 to vector<8x128xi32>
    %36 = arith.cmpi sge, %34, %35 : vector<8x128xi32>
    %c16_i32 = arith.constant 16 : i32
    %37 = vector.broadcast %c16_i32 : i32 to vector<8x128xi32>
    %38 = arith.cmpi slt, %34, %37 : vector<8x128xi32>
    %39 = arith.andi %36, %38 : vector<8x128xi1>
    %40 = math.exp %33 : vector<8x128xf32>
    %41 = arith.select %39, %40, %33 : vector<8x128xi1>, vector<8x128xf32>
    %c0_16 = arith.constant 0 : index
    %c0_17 = arith.constant 0 : index
    %42 = vector.load %arg7[%c0_16, %c0_17] : memref<8x128xf32, #tpu.memory_space<vmem>>, vector<8x128xf32>
    tpu.vector_store %arg7[%c0_16, %c0_17], %41 {strides = array<i32>} : memref<8x128xf32, #tpu.memory_space<vmem>>, vector<8x128xf32>,
    return
  }
  func.func @transform_0(%arg0: i32) -> i32 {
    %c0_i32 = arith.constant 0 : i32
    %c0_i32_0 = arith.constant 0 : i32
    return %c0_i32 : i32
  }
  func.func @transform_1(%arg0: i32) -> (i32, i32) {
    %c0_i32 = arith.constant 0 : i32
    %c0_i32_0 = arith.constant 0 : i32
    return %arg0, %c0_i32 : i32, i32
  }
  func.func @transform_2(%arg0: i32) -> (i32, i32, i32) {
    %c0_i32 = arith.constant 0 : i32
    %c0_i32_0 = arith.constant 0 : i32
    %c0_i32_1 = arith.constant 0 : i32
    return %arg0, %c0_i32, %c0_i32_0 : i32, i32, i32
  }
  func.func @transform_3(%arg0: i32) -> (i32, i32, i32) {
    %c0_i32 = arith.constant 0 : i32
    %c0_i32_0 = arith.constant 0 : i32
    %c0_i32_1 = arith.constant 0 : i32
    return %arg0, %c0_i32, %c0_i32_0 : i32, i32, i32
  }
  func.func @transform_4(%arg0: i32) -> (i32, i32) {
    %c0_i32 = arith.constant 0 : i32
    %c0_i32_0 = arith.constant 0 : i32
    %c0_i32_1 = arith.constant 0 : i32
    return %c0_i32, %c0_i32_0 : i32, i32
  }
  func.func @transform_5(%arg0: i32) -> (i32, i32) {
    %c0_i32 = arith.constant 0 : i32
    %c0_i32_0 = arith.constant 0 : i32
    %c0_i32_1 = arith.constant 0 : i32
    return %c0_i32, %c0_i32_0 : i32, i32
  }
  func.func @transform_6(%arg0: i32) -> (i32, i32) {
    %c0_i32 = arith.constant 0 : i32
    %c0_i32_0 = arith.constant 0 : i32
    return %arg0, %c0_i32 : i32, i32
  }
}

</mosaic_0001>

<llo_original>
// kernel: tpu_custom_call.1
$region0: #{tpu_custom_call.1}
  #allocation0 [shape = 'u32[]', space=smem, size = 0x4, offset = 0x4, fixed_abs, tag = 'smem constant byte address 0x4 - core index']
  #allocation1 [shape = 'u32[144,128]{1,0:T(1,128)}', space=vmem, size = 0x12000, scoped, tag = 'internal scratch']
  %s0 = inlined_call_operand.hbm [shape: f32[4], index: 0, kind: input, shape index: {}]
  %s1 = inlined_call_operand.hbm [shape: f32[8,16], index: 1, kind: input, shape index: {}]
  %s2 = inlined_call_operand.hbm [shape: f32[8,16,16], index: 2, kind: input, shape index: {}]
  %s3 = inlined_call_operand.hbm [shape: f32[8,16,16], index: 3, kind: input, shape index: {}]
  %s4 = inlined_call_operand.hbm [shape: f32[16,128], index: 4, kind: input, shape index: {}]
  %s5 = inlined_call_operand.vmem [shape: f32[1,128], index: 5, kind: input, shape index: {}]
  %s6 = inlined_call_operand.hbm [shape: f32[8,128], index: 6, kind: output, shape index: {}]
  %s7 = sld [smem:[#allocation0]]
  $region54: #{tpu_custom_call.1} parent=0
    _
  %s9 = ssub.s32 1, %s7
  %s10 = scalar_select 0, %s9, %s7
  $region1: #{tpu_custom_call.1} parent=0
    #allocation2 [shape = 'u8[512]{0}', space=smem, size = 0x200, scoped, tag = 'input window, operand 0, single buffered']
    #allocation3 [shape = 's32[1]{0}', space=sflag, size = 0x4, scoped, tag = 'scoped memory for tpu_custom_call.1']
    #allocation4 [shape = 's32[1]{0}', space=sflag, size = 0x4, scoped, tag = 'scoped memory for tpu_custom_call.1']
    #allocation5 [shape = 's32[1]{0}', space=sflag, size = 0x4, scoped, tag = 'scoped memory for tpu_custom_call.1']
    #allocation6 [shape = 'u8[4096]{0}', space=vmem, size = 0x1000, scoped, tag = 'input window, operand 1, single buffered']
    #allocation7 [shape = 'u8[65536]{0}', space=vmem, size = 0x10000, scoped, tag = 'input window, operand 2, single buffered']
    #allocation8 [shape = 's32[1]{0}', space=sflag, size = 0x4, scoped, tag = 'scoped memory for tpu_custom_call.1']
    #allocation9 [shape = 'u8[65536]{0}', space=vmem, size = 0x10000, scoped, tag = 'input window, operand 3, single buffered']
    #allocation10 [shape = 'u8[8192]{0}', space=vmem, size = 0x2000, scoped, tag = 'input window, operand 4, single buffered']
    #allocation11 [shape = 's32[1]{0}', space=sflag, size = 0x4, scoped, tag = 'scoped memory for tpu_custom_call.1']
    #allocation12 [shape = 'u8[4096]{0}', space=vmem, size = 0x1000, scoped, tag = 'output window, operand 0, single buffered']
    %11 = vsyncpa [#allocation5], 0
    %12 = vsyncpa [#allocation3], 0
    %13 = vsyncpa [#allocation8], 0
    %14 = vsyncpa [#allocation11], 0
    %15 = vsyncpa [#allocation4], 0
    // Predicated region
    $region2: #{tpu_custom_call.1} parent=1 // pred_check
      _
    $region3: #{tpu_custom_call.1} parent=1 // pred_check_branch
      %17 = sbr.rel (0) target = $region5
    $region4: #{tpu_custom_call.1} parent=1 // pred_region
      %s19 = ssub.s32 16, 16
      %20 = vsyncadd [#allocation5], %s19
      %23 = dma.hbm_to_smem %s0, 16, [#allocation2], [#allocation5]
    $region5: #{tpu_custom_call.1} parent=1 // pred_fallthru
      _
    // Predicated region
    $region6: #{tpu_custom_call.1} parent=1 // pred_check
      _
    $region7: #{tpu_custom_call.1} parent=1 // pred_check_branch
      %25 = sbr.rel (0) target = $region9
    $region8: #{tpu_custom_call.1} parent=1 // pred_region
      %s27 = ssub.s32 128, 128
      %28 = vsyncadd [#allocation3], %s27
      %s30 = sshll.u32 [#allocation6], 4
      %s31 = int_to_ptr.vmem [resolvable:$true] %s30
      %33 = dma.hbm_to_vmem [thread:$0]  %s1, 128, %s31, [#allocation3]
    $region9: #{tpu_custom_call.1} parent=1 // pred_fallthru
      _
    // Predicated region
    $region10: #{tpu_custom_call.1} parent=1 // pred_check
      _
    $region11: #{tpu_custom_call.1} parent=1 // pred_check_branch
      %35 = sbr.rel (0) target = $region13
    $region12: #{tpu_custom_call.1} parent=1 // pred_region
      %s37 = ssub.s32 2048, 2048
      %38 = vsyncadd [#allocation8], %s37
      %s39 = sshll.u32 [#allocation7], 4
      %s40 = int_to_ptr.vmem [resolvable:$true] %s39
      %45 = dma.hbm_to_vmem [thread:$0]  %s2, 2048, %s40, [#allocation8], 128, 128, 8
    $region13: #{tpu_custom_call.1} parent=1 // pred_fallthru
      _
    // Predicated region
    $region14: #{tpu_custom_call.1} parent=1 // pred_check
      _
    $region15: #{tpu_custom_call.1} parent=1 // pred_check_branch
      %47 = sbr.rel (0) target = $region17
    $region16: #{tpu_custom_call.1} parent=1 // pred_region
      %s49 = ssub.s32 2048, 2048
      %50 = vsyncadd [#allocation8], %s49
      %s51 = sshll.u32 [#allocation9], 4
      %s52 = int_to_ptr.vmem [resolvable:$true] %s51
      %57 = dma.hbm_to_vmem [thread:$0]  %s3, 2048, %s52, [#allocation8], 128, 128, 8
    $region17: #{tpu_custom_call.1} parent=1 // pred_fallthru
      _
    // Predicated region
    $region18: #{tpu_custom_call.1} parent=1 // pred_check
      _
    $region19: #{tpu_custom_call.1} parent=1 // pred_check_branch
      %59 = sbr.rel (0) target = $region21
    $region20: #{tpu_custom_call.1} parent=1 // pred_region
      %s61 = ssub.s32 256, 256
      %62 = vsyncadd [#allocation11], %s61
      %s63 = sshll.u32 [#allocation10], 4
      %s64 = int_to_ptr.vmem [resolvable:$true] %s63
      %69 = dma.hbm_to_vmem [thread:$0]  %s4, 256, %s64, [#allocation11], 128, 128, 8
    $region21: #{tpu_custom_call.1} parent=1 // pred_fallthru
      _
    // Predicated region
    $region22: #{tpu_custom_call.1} parent=1 // pred_check
      _
    $region23: #{tpu_custom_call.1} parent=1 // pred_check_branch
      %71 = sbr.rel (0) target = $region25
    $region24: #{tpu_custom_call.1} parent=1 // pred_region
      _
    $region25: #{tpu_custom_call.1} parent=1 // pred_fallthru
      _
    // Predicated region
    $region26: #{tpu_custom_call.1} parent=1 // pred_check
      _
    $region27: #{tpu_custom_call.1} parent=1 // pred_check_branch
      %73 = sbr.rel (0) target = $region29
    $region28: #{tpu_custom_call.1} parent=1 // pred_region
      %74 = dma.done [#allocation5], 16
    $region29: #{tpu_custom_call.1} parent=1 // pred_fallthru
      _
    // Predicated region
    $region30: #{tpu_custom_call.1} parent=1 // pred_check
      _
    $region31: #{tpu_custom_call.1} parent=1 // pred_check_branch
      %76 = sbr.rel (0) target = $region33
    $region32: #{tpu_custom_call.1} parent=1 // pred_region
      %77 = dma.done [#allocation3], 128
    $region33: #{tpu_custom_call.1} parent=1 // pred_fallthru
      _
    // Predicated region
    $region34: #{tpu_custom_call.1} parent=1 // pred_check
      _
    $region35: #{tpu_custom_call.1} parent=1 // pred_check_branch
      %79 = sbr.rel (0) target = $region37
    $region36: #{tpu_custom_call.1} parent=1 // pred_region
      %80 = dma.done [#allocation8], 2048
    $region37: #{tpu_custom_call.1} parent=1 // pred_fallthru
      _
    // Predicated region
    $region38: #{tpu_custom_call.1} parent=1 // pred_check
      _
    $region39: #{tpu_custom_call.1} parent=1 // pred_check_branch
      %82 = sbr.rel (0) target = $region41
    $region40: #{tpu_custom_call.1} parent=1 // pred_region
      %83 = dma.done [#allocation8], 2048
    $region41: #{tpu_custom_call.1} parent=1 // pred_fallthru
      _
    // Predicated region
    $region42: #{tpu_custom_call.1} parent=1 // pred_check
      _
    $region43: #{tpu_custom_call.1} parent=1 // pred_check_branch
      %85 = sbr.rel (0) target = $region45
    $region44: #{tpu_custom_call.1} parent=1 // pred_region
      %86 = dma.done [#allocation11], 256
    $region45: #{tpu_custom_call.1} parent=1 // pred_fallthru
      _
    %87 = sfence
    %v88 = vld [vmem:[#allocation6] sm:$0xff]
    %v89 = vld [vmem:[#allocation7] sm:$0xff]
    %v90 = vld [vmem:[#allocation7 + $0x8] sm:$0xff]
    %v91 = vld [vmem:[#allocation7 + $0x10] sm:$0xff]
    %v92 = vld [vmem:[#allocation7 + $0x18] sm:$0xff]
    %v93 = vld [vmem:[#allocation7 + $0x20] sm:$0xff]
    %v94 = vld [vmem:[#allocation7 + $0x28] sm:$0xff]
    %v95 = vld [vmem:[#allocation7 + $0x30] sm:$0xff]
    %v96 = vld [vmem:[#allocation7 + $0x38] sm:$0xff]
    %v97 = vld [vmem:[#allocation7 + $0x40] sm:$0xff]
    %v98 = vld [vmem:[#allocation7 + $0x48] sm:$0xff]
    %v99 = vld [vmem:[#allocation7 + $0x50] sm:$0xff]
    %v100 = vld [vmem:[#allocation7 + $0x58] sm:$0xff]
    %v101 = vld [vmem:[#allocation7 + $0x60] sm:$0xff]
    %v102 = vld [vmem:[#allocation7 + $0x68] sm:$0xff]
    %v103 = vld [vmem:[#allocation7 + $0x70] sm:$0xff]
    %v104 = vld [vmem:[#allocation7 + $0x78] sm:$0xff]
    %v105 = vld [vmem:[#allocation9] sm:$0xff]
    %v106 = vld [vmem:[#allocation9 + $0x8] sm:$0xff]
    %v107 = vld [vmem:[#allocation9 + $0x10] sm:$0xff]
    %v108 = vld [vmem:[#allocation9 + $0x18] sm:$0xff]
    %v109 = vld [vmem:[#allocation9 + $0x20] sm:$0xff]
    %v110 = vld [vmem:[#allocation9 + $0x28] sm:$0xff]
    %v111 = vld [vmem:[#allocation9 + $0x30] sm:$0xff]
    %v112 = vld [vmem:[#allocation9 + $0x38] sm:$0xff]
    %v113 = vld [vmem:[#allocation9 + $0x40] sm:$0xff]
    %v114 = vld [vmem:[#allocation9 + $0x48] sm:$0xff]
    %v115 = vld [vmem:[#allocation9 + $0x50] sm:$0xff]
    %v116 = vld [vmem:[#allocation9 + $0x58] sm:$0xff]
    %v117 = vld [vmem:[#allocation9 + $0x60] sm:$0xff]
    %v118 = vld [vmem:[#allocation9 + $0x68] sm:$0xff]
    %v119 = vld [vmem:[#allocation9 + $0x70] sm:$0xff]
    %v120 = vld [vmem:[#allocation9 + $0x78] sm:$0xff]
    %s121 = sld [smem:[#allocation2 + $0x3]]
    %v122 = vstv %s121
    %v123 = vmul.f32 %v122, %v88
    %s124 = sld [smem:[#allocation2 + $0x2]]
    %v125 = vstv %s124
    %v126 = vadd.f32 %v123, %v125
    %v127 = vmul.f32 %v126, %v88
    %s128 = sld [smem:[#allocation2 + $0x1]]
    %v129 = vstv %s128
    %v130 = vadd.f32 %v127, %v129
    %v131 = vmul.f32 %v130, %v88
    %s132 = sld [smem:[#allocation2]]
    %v133 = vstv %s132
    %v134 = vadd.f32 %v131, %v133
    %vm135 = vcmask 130048
    %v136 = vsel %vm135, %v89, 0.0
    %v137 = vsel %vm135, %v90, 0.0
    %v138 = vadd.f32 %v136, %v137
    %v139 = vrot.slane %v138, 4
    %v140 = vadd.f32 %v138, %v139
    %v141 = vrot.slane %v140, 2
    %v142 = vadd.f32 %v140, %v141
    %v143 = vrot.slane %v142, 1
    %v144 = vadd.f32 %v142, %v143
    %v145 = vsel %vm135, %v91, 0.0
    %v146 = vsel %vm135, %v92, 0.0
    %v147 = vadd.f32 %v145, %v146
    %v148 = vrot.slane %v147, 4
    %v149 = vadd.f32 %v147, %v148
    %v150 = vrot.slane %v149, 2
    %v151 = vadd.f32 %v149, %v150
    %v152 = vrot.slane %v151, 1
    %v153 = vadd.f32 %v151, %v152
    %v154 = vsel %vm135, %v93, 0.0
    %v155 = vsel %vm135, %v94, 0.0
    %v156 = vadd.f32 %v154, %v155
    %v157 = vrot.slane %v156, 4
    %v158 = vadd.f32 %v156, %v157
    %v159 = vrot.slane %v158, 2
    %v160 = vadd.f32 %v158, %v159
    %v161 = vrot.slane %v160, 1
    %v162 = vadd.f32 %v160, %v161
    %v163 = vsel %vm135, %v95, 0.0
    %v164 = vsel %vm135, %v96, 0.0
    %v165 = vadd.f32 %v163, %v164
    %v166 = vrot.slane %v165, 4
    %v167 = vadd.f32 %v165, %v166
    %v168 = vrot.slane %v167, 2
    %v169 = vadd.f32 %v167, %v168
    %v170 = vrot.slane %v169, 1
    %v171 = vadd.f32 %v169, %v170
    %v172 = vsel %vm135, %v97, 0.0
    %v173 = vsel %vm135, %v98, 0.0
    %v174 = vadd.f32 %v172, %v173
    %v175 = vrot.slane %v174, 4
    %v176 = vadd.f32 %v174, %v175
    %v177 = vrot.slane %v176, 2
    %v178 = vadd.f32 %v176, %v177
    %v179 = vrot.slane %v178, 1
    %v180 = vadd.f32 %v178, %v179
    %v181 = vsel %vm135, %v99, 0.0
    %v182 = vsel %vm135, %v100, 0.0
    %v183 = vadd.f32 %v181, %v182
    %v184 = vrot.slane %v183, 4
    %v185 = vadd.f32 %v183, %v184
    %v186 = vrot.slane %v185, 2
    %v187 = vadd.f32 %v185, %v186
    %v188 = vrot.slane %v187, 1
    %v189 = vadd.f32 %v187, %v188
    %v190 = vsel %vm135, %v101, 0.0
    %v191 = vsel %vm135, %v102, 0.0
    %v192 = vadd.f32 %v190, %v191
    %v193 = vrot.slane %v192, 4
    %v194 = vadd.f32 %v192, %v193
    %v195 = vrot.slane %v194, 2
    %v196 = vadd.f32 %v194, %v195
    %v197 = vrot.slane %v196, 1
    %v198 = vadd.f32 %v196, %v197
    %v199 = vsel %vm135, %v103, 0.0
    %v200 = vsel %vm135, %v104, 0.0
    %v201 = vadd.f32 %v199, %v200
    %v202 = vrot.slane %v201, 4
    %v203 = vadd.f32 %v201, %v202
    %v204 = vrot.slane %v203, 2
    %v205 = vadd.f32 %v203, %v204
    %v206 = vrot.slane %v205, 1
    %v207 = vadd.f32 %v205, %v206
    %v209 = vrot.slane %v134, 1
    %v210 = vrot.slane %v134, 2
    %v211 = vrot.slane %v134, 3
    %v212 = vrot.slane %v134, 4
    %v213 = vrot.slane %v134, 5
    %v214 = vrot.slane %v134, 6
    %v215 = vrot.slane %v134, 7
    %v224 = vmul.f32 %v144, %v134
    %v225 = vmul.f32 %v153, %v209
    %v226 = vmul.f32 %v162, %v210
    %v227 = vmul.f32 %v171, %v211
    %v228 = vmul.f32 %v180, %v212
    %v229 = vmul.f32 %v189, %v213
    %v230 = vmul.f32 %v198, %v214
    %v231 = vmul.f32 %v207, %v215
    %v232 = vlaneseq
    %v233 = vshrl.u32 %v232, 7
    %v234 = vsub.s32 0, %v233
    %v235 = vrot.slane %v224, %v234
    %v236 = vlaneseq
    %v237 = vshrl.u32 %v236, 7
    %v238 = vsub.s32 0, %v237
    %v239 = vrot.slane %v225, %v238
    %v240 = vlaneseq
    %v241 = vshrl.u32 %v240, 7
    %v242 = vsub.s32 0, %v241
    %v243 = vrot.slane %v226, %v242
    %v244 = vlaneseq
    %v245 = vshrl.u32 %v244, 7
    %v246 = vsub.s32 0, %v245
    %v247 = vrot.slane %v227, %v246
    %v248 = vlaneseq
    %v249 = vshrl.u32 %v248, 7
    %v250 = vsub.s32 0, %v249
    %v251 = vrot.slane %v228, %v250
    %v252 = vlaneseq
    %v253 = vshrl.u32 %v252, 7
    %v254 = vsub.s32 0, %v253
    %v255 = vrot.slane %v229, %v254
    %v256 = vlaneseq
    %v257 = vshrl.u32 %v256, 7
    %v258 = vsub.s32 0, %v257
    %v259 = vrot.slane %v230, %v258
    %v260 = vlaneseq
    %v261 = vshrl.u32 %v260, 7
    %v262 = vsub.s32 0, %v261
    %v263 = vrot.slane %v231, %v262
    %v264 = vmul.f32 %v89, %v235
    %v265 = vmul.f32 %v90, %v235
    %v266 = vmul.f32 %v91, %v239
    %v267 = vmul.f32 %v92, %v239
    %v268 = vmul.f32 %v93, %v243
    %v269 = vmul.f32 %v94, %v243
    %v270 = vmul.f32 %v95, %v247
    %v271 = vmul.f32 %v96, %v247
    %v272 = vmul.f32 %v97, %v251
    %v273 = vmul.f32 %v98, %v251
    %v274 = vmul.f32 %v99, %v255
    %v275 = vmul.f32 %v100, %v255
    %v276 = vmul.f32 %v101, %v259
    %v277 = vmul.f32 %v102, %v259
    %v278 = vmul.f32 %v103, %v263
    %v279 = vmul.f32 %v104, %v263
    %v280 = vsel %vm135, %v264, 0.0
    %281 = vadd.xlane.f32.xlu0 %v280
    %v282 = vpop.xlane.xlu0 %281
    %v283 = vsel %vm135, %v265, 0.0
    %284 = vadd.xlane.f32.xlu0 %v283
    %v285 = vpop.xlane.xlu0 %284
    %v286 = vsel %vm135, %v266, 0.0
    %287 = vadd.xlane.f32.xlu0 %v286
    %v288 = vpop.xlane.xlu0 %287
    %v289 = vsel %vm135, %v267, 0.0
    %290 = vadd.xlane.f32.xlu0 %v289
    %v291 = vpop.xlane.xlu0 %290
    %v292 = vsel %vm135, %v268, 0.0
    %293 = vadd.xlane.f32.xlu0 %v292
    %v294 = vpop.xlane.xlu0 %293
    %v295 = vsel %vm135, %v269, 0.0
    %296 = vadd.xlane.f32.xlu0 %v295
    %v297 = vpop.xlane.xlu0 %296
    %v298 = vsel %vm135, %v270, 0.0
    %299 = vadd.xlane.f32.xlu0 %v298
    %v300 = vpop.xlane.xlu0 %299
    %v301 = vsel %vm135, %v271, 0.0
    %302 = vadd.xlane.f32.xlu0 %v301
    %v303 = vpop.xlane.xlu0 %302
    %v304 = vsel %vm135, %v272, 0.0
    %305 = vadd.xlane.f32.xlu0 %v304
    %v306 = vpop.xlane.xlu0 %305
    %v307 = vsel %vm135, %v273, 0.0
    %308 = vadd.xlane.f32.xlu0 %v307
    %v309 = vpop.xlane.xlu0 %308
    %v310 = vsel %vm135, %v274, 0.0
    %311 = vadd.xlane.f32.xlu0 %v310
    %v312 = vpop.xlane.xlu0 %311
    %v313 = vsel %vm135, %v275, 0.0
    %314 = vadd.xlane.f32.xlu0 %v313
    %v315 = vpop.xlane.xlu0 %314
    %v316 = vsel %vm135, %v276, 0.0
    %317 = vadd.xlane.f32.xlu0 %v316
    %v318 = vpop.xlane.xlu0 %317
    %v319 = vsel %vm135, %v277, 0.0
    %320 = vadd.xlane.f32.xlu0 %v319
    %v321 = vpop.xlane.xlu0 %320
    %v322 = vsel %vm135, %v278, 0.0
    %323 = vadd.xlane.f32.xlu0 %v322
    %v324 = vpop.xlane.xlu0 %323
    %v325 = vsel %vm135, %v279, 0.0
    %326 = vadd.xlane.f32.xlu0 %v325
    %v327 = vpop.xlane.xlu0 %326
    %v328 = vmul.f32 %v105, %v282
    %v329 = vmul.f32 %v106, %v285
    %v330 = vmul.f32 %v107, %v288
    %v331 = vmul.f32 %v108, %v291
    %v332 = vmul.f32 %v109, %v294
    %v333 = vmul.f32 %v110, %v297
    %v334 = vmul.f32 %v111, %v300
    %v335 = vmul.f32 %v112, %v303
    %v336 = vmul.f32 %v113, %v306
    %v337 = vmul.f32 %v114, %v309
    %v338 = vmul.f32 %v115, %v312
    %v339 = vmul.f32 %v116, %v315
    %v340 = vmul.f32 %v117, %v318
    %v341 = vmul.f32 %v118, %v321
    %v342 = vmul.f32 %v119, %v324
    %v343 = vmul.f32 %v120, %v327
    %v344 = vsel %vm135, %v328, 0.0
    %v345 = vsel %vm135, %v329, 0.0
    %v346 = vadd.f32 %v344, %v345
    %v347 = vrot.slane %v346, 4
    %v348 = vadd.f32 %v346, %v347
    %v349 = vrot.slane %v348, 2
    %v350 = vadd.f32 %v348, %v349
    %v351 = vrot.slane %v350, 1
    %v352 = vadd.f32 %v350, %v351
    %v353 = vsel %vm135, %v330, 0.0
    %v354 = vsel %vm135, %v331, 0.0
    %v355 = vadd.f32 %v353, %v354
    %v356 = vrot.slane %v355, 4
    %v357 = vadd.f32 %v355, %v356
    %v358 = vrot.slane %v357, 2
    %v359 = vadd.f32 %v357, %v358
    %v360 = vrot.slane %v359, 1
    %v361 = vadd.f32 %v359, %v360
    %v362 = vsel %vm135, %v332, 0.0
    %v363 = vsel %vm135, %v333, 0.0
    %v364 = vadd.f32 %v362, %v363
    %v365 = vrot.slane %v364, 4
    %v366 = vadd.f32 %v364, %v365
    %v367 = vrot.slane %v366, 2
    %v368 = vadd.f32 %v366, %v367
    %v369 = vrot.slane %v368, 1
    %v370 = vadd.f32 %v368, %v369
    %v371 = vsel %vm135, %v334, 0.0
    %v372 = vsel %vm135, %v335, 0.0
    %v373 = vadd.f32 %v371, %v372
    %v374 = vrot.slane %v373, 4
    %v375 = vadd.f32 %v373, %v374
    %v376 = vrot.slane %v375, 2
    %v377 = vadd.f32 %v375, %v376
    %v378 = vrot.slane %v377, 1
    %v379 = vadd.f32 %v377, %v378
    %v380 = vsel %vm135, %v336, 0.0
    %v381 = vsel %vm135, %v337, 0.0
    %v382 = vadd.f32 %v380, %v381
    %v383 = vrot.slane %v382, 4
    %v384 = vadd.f32 %v382, %v383
    %v385 = vrot.slane %v384, 2
    %v386 = vadd.f32 %v384, %v385
    %v387 = vrot.slane %v386, 1
    %v388 = vadd.f32 %v386, %v387
    %v389 = vsel %vm135, %v338, 0.0
    %v390 = vsel %vm135, %v339, 0.0
    %v391 = vadd.f32 %v389, %v390
    %v392 = vrot.slane %v391, 4
    %v393 = vadd.f32 %v391, %v392
    %v394 = vrot.slane %v393, 2
    %v395 = vadd.f32 %v393, %v394
    %v396 = vrot.slane %v395, 1
    %v397 = vadd.f32 %v395, %v396
    %v398 = vsel %vm135, %v340, 0.0
    %v399 = vsel %vm135, %v341, 0.0
    %v400 = vadd.f32 %v398, %v399
    %v401 = vrot.slane %v400, 4
    %v402 = vadd.f32 %v400, %v401
    %v403 = vrot.slane %v402, 2
    %v404 = vadd.f32 %v402, %v403
    %v405 = vrot.slane %v404, 1
    %v406 = vadd.f32 %v404, %v405
    %v407 = vsel %vm135, %v342, 0.0
    %v408 = vsel %vm135, %v343, 0.0
    %v409 = vadd.f32 %v407, %v408
    %v410 = vrot.slane %v409, 4
    %v411 = vadd.f32 %v409, %v410
    %v412 = vrot.slane %v411, 2
    %v413 = vadd.f32 %v411, %v412
    %v414 = vrot.slane %v413, 1
    %v415 = vadd.f32 %v413, %v414
    %v416 = vld [vmem:[#allocation10] sm:$0xff]
    %v417 = vld [vmem:[#allocation10 + $0x8] sm:$0xff]
    %v418 = vld [vmem:[%s5] sm:$0x1]
    %v420 = vlaneseq
    %v421 = vshrl.u32 %v420, 7
    %v422 = vsub.s32 0, %v421
    %v423 = vrot.slane %v418, %v422
    %vm433 = vcmask 1041409
    %v434 = vsel %vm433, %v361, %v352
    %vm435 = vcmask 1042434
    %v436 = vsel %vm435, %v370, %v434
    %vm437 = vcmask 1043459
    %v438 = vsel %vm437, %v379, %v436
    %vm439 = vcmask 1044484
    %v440 = vsel %vm439, %v388, %v438
    %vm441 = vcmask 1045509
    %v442 = vsel %vm441, %v397, %v440
    %vm443 = vcmask 1046534
    %v444 = vsel %vm443, %v406, %v442
    %vm445 = vcmask 1047559
    %v446 = vsel %vm445, %v415, %v444
    %v447 = vsel %vm135, %v446, 0
    %449 = vmatprep.subr.mxu0 0.0
    %450 = vmatpush1.msra.mxu0 0.0
    %451 = vmatprep.subr.mxu0 0.0
    %452 = vmatpush1.msra.mxu0 0.0
    %453 = vmatprep.subr.mxu0 0.0
    %454 = vmatpush1.msra.mxu0 0.0
    %455 = vmatprep.subr.mxu0 0.0
    %456 = vmatpush1.msra.mxu0 0.0
    %457 = vmatprep.subr.mxu0 0.0
    %458 = vmatpush1.msra.mxu0 0.0
    %459 = vmatprep.subr.mxu0 0.0
    %460 = vmatpush1.msra.mxu0 0.0
    %461 = vmatprep.subr.mxu0 0.0
    %462 = vmatpush1.msra.mxu0 0.0
    %463 = vmatprep.subr.mxu0 0.0
    %464 = vmatpush1.msra.mxu0 0.0
    %465 = vmatprep.subr.mxu0 0.0
    %466 = vmatpush1.msra.mxu0 0.0
    %467 = vmatprep.subr.mxu0 0.0
    %468 = vmatpush1.msra.mxu0 0.0
    %469 = vmatprep.subr.mxu0 0.0
    %470 = vmatpush1.msra.mxu0 0.0
    %471 = vmatprep.subr.mxu0 0.0
    %472 = vmatpush1.msra.mxu0 0.0
    %473 = vmatprep.subr.mxu0 0.0
    %474 = vmatpush1.msra.mxu0 0.0
    %475 = vmatprep.subr.mxu0 0.0
    %476 = vmatpush1.msra.mxu0 0.0
    %477 = vmatprep.subr.mxu0 0.0
    %478 = vmatpush1.msra.mxu0 %v417
    %479 = vmatprep.subr.mxu0 0.0
    %480 = vmatpush1.msra.mxu0 %v416
    %481 = vmatprep.subr.mxu0 0.0
    %482 = vmatpush2.msra.mxu0 0.0
    %483 = vmatprep.subr.mxu0 0.0
    %484 = vmatpush2.msra.mxu0 0.0
    %485 = vmatprep.subr.mxu0 0.0
    %486 = vmatpush2.msra.mxu0 0.0
    %487 = vmatprep.subr.mxu0 0.0
    %488 = vmatpush2.msra.mxu0 0.0
    %489 = vmatprep.subr.mxu0 0.0
    %490 = vmatpush2.msra.mxu0 0.0
    %491 = vmatprep.subr.mxu0 0.0
    %492 = vmatpush2.msra.mxu0 0.0
    %493 = vmatprep.subr.mxu0 0.0
    %494 = vmatpush2.msra.mxu0 0.0
    %495 = vmatprep.subr.mxu0 0.0
    %496 = vmatpush2.msra.mxu0 0.0
    %497 = vmatprep.subr.mxu0 0.0
    %498 = vmatpush2.msra.mxu0 0.0
    %499 = vmatprep.subr.mxu0 0.0
    %500 = vmatpush2.msra.mxu0 0.0
    %501 = vmatprep.subr.mxu0 0.0
    %502 = vmatpush2.msra.mxu0 0.0
    %503 = vmatprep.subr.mxu0 0.0
    %504 = vmatpush2.msra.mxu0 0.0
    %505 = vmatprep.subr.mxu0 0.0
    %506 = vmatpush2.msra.mxu0 0.0
    %507 = vmatprep.subr.mxu0 0.0
    %508 = vmatpush2.msra.mxu0 0.0
    %509 = vmatprep.subr.mxu0 0.0
    %510 = vmatpush2.msra.mxu0 0.0
    %511 = vmatprep.subr.mxu0 0.0
    %512 = vmatpush2.msra.mxu0 0.0
    %513 = vmatprep.mubr.f32.mxu0 0.0
    %514 = vmatmul.mubr.f32.gmra.mxu0 %v447
    %v515 = vpop.f32.mrf.mxu0
    %v516 = vadd.f32 %v423, %v515
    %v517 = vpop.f32.mrf.mxu0
    %518 = vdwg.mxu0
    %v519 = vlaneseq
    %v520 = vand.u32 %v519, 127
    %vm521 = vcmp.ge.s32.totalorder %v520, 8
    %vm522 = vcmp.lt.s32.totalorder %v520, 16
    %vm523 = vmand %vm521, %vm522
    %v524 = vmul.f32 %v516, 1.442695
    %v525 = vpow.pop %v524
    %v526 = vsel %vm523, %v525, %v516
    %527 = vst [vmem:[#allocation12] sm:$0xff] %v526
    // Predicated region
    $region46: #{tpu_custom_call.1} parent=1 // pred_check
      _
    $region47: #{tpu_custom_call.1} parent=1 // pred_check_branch
      %529 = sbr.rel (0) target = $region49
    $region48: #{tpu_custom_call.1} parent=1 // pred_region
      %s531 = ssub.s32 128, 128
      %532 = vsyncadd [#allocation4], %s531
      %s534 = sshll.u32 [#allocation12], 4
      %s535 = int_to_ptr.vmem [resolvable:$true] %s534
      %537 = dma.vmem_to_hbm [thread:$0]  %s535, 128, %s6, [#allocation4]
    $region49: #{tpu_custom_call.1} parent=1 // pred_fallthru
      _
    // Predicated region
    $region50: #{tpu_custom_call.1} parent=1 // pred_check
      _
    $region51: #{tpu_custom_call.1} parent=1 // pred_check_branch
      %539 = sbr.rel (0) target = $region53
    $region52: #{tpu_custom_call.1} parent=1 // pred_region
      %540 = dma.done [#allocation4], 128
    $region53: #{tpu_custom_call.1} parent=1 // pred_fallthru
      _
    %541 = vsyncpa [#allocation3], 1
    %542 = vsyncpa [#allocation8], 1
    %543 = vsyncpa [#allocation11], 1
    %544 = vsyncpa [#allocation4], 1
    %545 = vsyncpa [#allocation5], 1

</llo_original>
